<compile_context>
chip_gen: v6e
topology: v6e:2x2x1
jax: 0.10.0
libtpu: 0.0.40
codegen_flags: <defaults>
</compile_context>

<pallas_src>
import jax
import jax.numpy as jnp
from jax.experimental import pallas as pl
from jax.experimental.pallas import tpu as pltpu

_LANES = 128


def _affine_kernel(wb_ref, x_ref, o_ref):
    # wb_ref: (2,) f32 in SMEM -> [weight, bias].  x_ref / o_ref: VMEM tiles.
    w = wb_ref[0]
    b = wb_ref[1]
    xv = x_ref[...].astype(jnp.float32)
    o_ref[...] = (xv * w + b).astype(o_ref.dtype)


def _sublane_granule(dtype) -> int:
    # Minimum second-to-last block granule: 8 (4-byte), 16 (2-byte), 32 (1-byte).
    itemsize = jnp.dtype(dtype).itemsize
    return 8 * max(1, 4 // itemsize)


def _pick_tile(rows: int, granule: int, target: int) -> int:
    """Row-tile size: granule-aligned, ~<= target, and >=2 tiles when possible
    so the v7x megacore ('parallel' axis) has work for both TensorCores."""
    if rows <= granule:
        return rows                          # single block == full dim (legal)
    n_tiles = max(2, -(-rows // target))     # cdiv, at least 2 tiles
    tr = -(-rows // n_tiles)                 # cdiv
    tr = -(-tr // granule) * granule         # round up to dtype granule
    return tr


def _run_affine(wb, arr2d, tr, lanes, dtype):
    rows = arr2d.shape[0]
    grid = (pl.cdiv(rows, tr),)
    return pl.pallas_call(
        _affine_kernel,
        out_shape=jax.ShapeDtypeStruct((rows, lanes), dtype),
        grid=grid,
        in_specs=[
            pl.BlockSpec(memory_space=pltpu.MemorySpace.SMEM),   # (2,) [w, b]
            pl.BlockSpec((tr, lanes), lambda i: (i, 0)),
        ],
        out_specs=pl.BlockSpec((tr, lanes), lambda i: (i, 0)),
        compiler_params=pltpu.CompilerParams(
            dimension_semantics=("parallel",),   # v7x: shard row tiles over 2 TCs
        ),
    )(wb, arr2d)


def linear11(x, w, b, *, tile_rows: int = 4096):
    """y = x @ W^T + b for W: (1, 1), b: (1,).  x: (N, 1).  Matches nn.Linear(1, 1)."""
    assert x.ndim == 2 and x.shape[1] == 1, "expected (N, 1) input"
    n = x.shape[0]
    dtype = x.dtype
    granule = _sublane_granule(dtype)

    # Merge weight & bias scalars into one flat SMEM array (avoids padded (1,1) slabs).
    wb = jnp.concatenate([
        jnp.asarray(w, jnp.float32).reshape(1),
        jnp.asarray(b, jnp.float32).reshape(1),
    ])

    if n % _LANES == 0:
        # Lane-dense fast path: contiguous (free) reshape, full-width stores,
        # no pad / tail-slice HBM traffic.
        rows = n // _LANES
        slab = x.reshape(rows, _LANES)
        tr = _pick_tile(rows, granule, tile_rows)
        out = _run_affine(wb, slab, tr, _LANES, dtype)
        return out.reshape(n, 1)

    # Unaligned fallback: operate on the (N, 1) column directly.  Last block
    # dim (1) equals the full array dim, so the BlockSpec is legal; stores are
    # masked but there is still zero extra wrapper HBM traffic.
    tr = _pick_tile(n, granule, 1024)
    return _run_affine(wb, x, tr, 1, dtype)


if __name__ == "__main__":
    key = jax.random.PRNGKey(0)
    kx, kw, kb, kx2, kx3 = jax.random.split(key, 5)

    # Deterministic "parameters" for nn.Linear(1, 1): weight (1, 1), bias (1,).
    w = jax.random.uniform(kw, (1, 1), jnp.float32, minval=-1.0, maxval=1.0)
    b = jax.random.uniform(kb, (1,), jnp.float32, minval=-1.0, maxval=1.0)

    # Small input consistent with Linear(1, 1): batch of 8 rows, 1 feature.
    x = jax.random.normal(kx, (8, 1), jnp.float32)
    y = jax.block_until_ready(linear11(x, w, b))
    y_ref = x @ w.T + b
    assert y.shape == (8, 1)
    assert y.dtype == x.dtype
    assert jnp.allclose(y, y_ref, atol=1e-6, rtol=1e-6)

    # Lane-dense slab path: N = 21*128 -> multi-tile grid + partial last block.
    x2 = jax.random.normal(kx2, (2688, 1), jnp.float32)
    y2 = jax.block_until_ready(linear11(x2, w, b))
    assert y2.shape == (2688, 1)
    assert jnp.allclose(y2, x2 @ w.T + b, atol=1e-6, rtol=1e-6)

    # Unaligned fallback path: N not a multiple of 128, multi-tile grid.
    x3 = jax.random.normal(kx3, (3000, 1), jnp.float32)
    y3 = jax.block_until_ready(linear11(x3, w, b))
    assert y3.shape == (3000, 1)
    assert jnp.allclose(y3, x3 @ w.T + b, atol=1e-6, rtol=1e-6)

    print("KERNEL_OK")
</pallas_src>

<mosaic_0001>
module attributes {stable_mosaic.version = 11 : i64} {
  func.func @_affine_kernel(%arg0: i32, %arg1: memref<2xf32, #tpu.memory_space<smem>>, %arg2: memref<8x1xf32, #tpu.memory_space<vmem>>, %arg3: memref<8x1xf32, #tpu.memory_space<vmem>>) attributes {dimension_semantics = [#tpu.dimension_semantics<parallel>], iteration_bounds = array<i64: 1>, scalar_prefetch = 0 : i64, scratch_operands = 0 : i64, tpu.core_type = #tpu.core_type<tc>, window_params = [{transform_indices = @transform_0, window_bounds = array<i64: 2>}, {transform_indices = @transform_1, window_bounds = array<i64: 8, 1>}, {transform_indices = @transform_2, window_bounds = array<i64: 8, 1>}]} {
    %c0 = arith.constant 0 : index
    %0 = memref.load %arg1[%c0] : memref<2xf32, #tpu.memory_space<smem>>
    %c1 = arith.constant 1 : index
    %1 = memref.load %arg1[%c1] : memref<2xf32, #tpu.memory_space<smem>>
    %c0_0 = arith.constant 0 : index
    %c0_1 = arith.constant 0 : index
    %2 = vector.load %arg2[%c0_0, %c0_1] : memref<8x1xf32, #tpu.memory_space<vmem>>, vector<8x1xf32>
    %3 = vector.broadcast %0 : f32 to vector<8x1xf32>
    %4 = arith.mulf %2, %3 : vector<8x1xf32>
    %5 = vector.broadcast %1 : f32 to vector<8x1xf32>
    %6 = arith.addf %4, %5 : vector<8x1xf32>
    %c0_2 = arith.constant 0 : index
    %c0_3 = arith.constant 0 : index
    %7 = vector.load %arg3[%c0_2, %c0_3] : memref<8x1xf32, #tpu.memory_space<vmem>>, vector<8x1xf32>
    tpu.vector_store %arg3[%c0_2, %c0_3], %6 {strides = array<i32>} : memref<8x1xf32, #tpu.memory_space<vmem>>, vector<8x1xf32>,
    return
  }
  func.func @transform_0(%arg0: i32) -> i32 {
    %c0_i32 = arith.constant 0 : i32
    %c0_i32_0 = arith.constant 0 : i32
    return %c0_i32 : i32
  }
  func.func @transform_1(%arg0: i32) -> (i32, i32) {
    %c0_i32 = arith.constant 0 : i32
    %c0_i32_0 = arith.constant 0 : i32
    return %arg0, %c0_i32 : i32, i32
  }
  func.func @transform_2(%arg0: i32) -> (i32, i32) {
    %c0_i32 = arith.constant 0 : i32
    %c0_i32_0 = arith.constant 0 : i32
    return %arg0, %c0_i32 : i32, i32
  }
}

</mosaic_0001>

<llo_original>
// kernel: tpu_custom_call.1
$region0: #{tpu_custom_call.1}
  #allocation0 [shape = 'u32[]', space=smem, size = 0x4, offset = 0x4, fixed_abs, tag = 'smem constant byte address 0x4 - core index']
  #allocation1 [shape = 'u32[144,128]{1,0:T(1,128)}', space=vmem, size = 0x12000, scoped, tag = 'internal scratch']
  %s0 = inlined_call_operand.vmem [shape: f32[2], index: 0, kind: input, shape index: {}]
  %s1 = inlined_call_operand.vmem [shape: f32[8,1], index: 1, kind: input, shape index: {}]
  %s2 = inlined_call_operand.vmem [shape: f32[8,1], index: 2, kind: output, shape index: {}]
  %s3 = sld [smem:[#allocation0]]
  $region22: #{tpu_custom_call.1} parent=0
    _
  %s5 = ssub.s32 1, %s3
  %s6 = scalar_select 0, %s5, %s3
  $region1: #{tpu_custom_call.1} parent=0
    #allocation2 [shape = 'u8[512]{0}', space=smem, size = 0x200, scoped, tag = 'input window, operand 0, single buffered']
    #allocation3 [shape = 's32[1]{0}', space=sflag, size = 0x4, scoped, tag = 'scoped memory for tpu_custom_call.1']
    %7 = vsyncpa [#allocation3], 0
    // Predicated region
    $region2: #{tpu_custom_call.1} parent=1 // pred_check
      _
    $region3: #{tpu_custom_call.1} parent=1 // pred_check_branch
      %9 = sbr.rel (0) target = $region5
    $region4: #{tpu_custom_call.1} parent=1 // pred_region
      %s11 = ssub.s32 16, 16
      %12 = vsyncadd [#allocation3], %s11
      %s14 = sshll.u32 %s0, 4
      %s15 = int_to_ptr.vmem [resolvable:$true] %s14
      %17 = dma.vmem_to_smem %s15, 16, [#allocation2], [#allocation3]
    $region5: #{tpu_custom_call.1} parent=1 // pred_fallthru
      _
    // Predicated region
    $region6: #{tpu_custom_call.1} parent=1 // pred_check
      _
    $region7: #{tpu_custom_call.1} parent=1 // pred_check_branch
      %19 = sbr.rel (0) target = $region9
    $region8: #{tpu_custom_call.1} parent=1 // pred_region
      _
    $region9: #{tpu_custom_call.1} parent=1 // pred_fallthru
      _
    // Predicated region
    $region10: #{tpu_custom_call.1} parent=1 // pred_check
      _
    $region11: #{tpu_custom_call.1} parent=1 // pred_check_branch
      %21 = sbr.rel (0) target = $region13
    $region12: #{tpu_custom_call.1} parent=1 // pred_region
      %22 = dma.done [#allocation3], 16
    $region13: #{tpu_custom_call.1} parent=1 // pred_fallthru
      _
    %23 = sfence
    %s24 = sld [smem:[#allocation2]]
    %s25 = sld [smem:[#allocation2 + $0x1]]
    %v26 = vld [vmem:[%s1] sm:$0xff]
    %v27 = vstv %s24
    %v28 = vmul.f32 %v26, %v27
    %v29 = vstv %s25
    %v30 = vadd.f32 %v28, %v29
    %vm31 = vcmask 7168
    %32 = vst.msk [vmem:[%s2] sm:$0xff] %vm31, %v30
    // Predicated region
    $region14: #{tpu_custom_call.1} parent=1 // pred_check
      _
    $region15: #{tpu_custom_call.1} parent=1 // pred_check_branch
      %34 = sbr.rel (0) target = $region17
    $region16: #{tpu_custom_call.1} parent=1 // pred_region
      _
    $region17: #{tpu_custom_call.1} parent=1 // pred_fallthru
      _
    // Predicated region
    $region18: #{tpu_custom_call.1} parent=1 // pred_check
      _
    $region19: #{tpu_custom_call.1} parent=1 // pred_check_branch
      %36 = sbr.rel (0) target = $region21
    $region20: #{tpu_custom_call.1} parent=1 // pred_region
      _
    $region21: #{tpu_custom_call.1} parent=1 // pred_fallthru
      _
    %37 = vsyncpa [#allocation3], 1

</llo_original>
